<compile_context>
chip_gen: v6e
topology: v6e:2x2x1
jax: 0.10.0
libtpu: 0.0.40
codegen_flags: <defaults>
</compile_context>

<pallas_src>
import functools

import jax
import jax.numpy as jnp
from jax.experimental import pallas as pl
from jax.experimental.pallas import tpu as pltpu


def _neg_fill_value(dtype):
    """Identity element for max in the given dtype."""
    if jnp.issubdtype(dtype, jnp.floating):
        return jnp.array(-jnp.inf, dtype=dtype)
    return jnp.array(jnp.iinfo(dtype).min, dtype=dtype)


def _largest_divisor_leq(n, cap):
    """Largest divisor of n that is <= cap (>= 1)."""
    n = int(n)
    cap = max(1, min(int(cap), n))
    for d in range(cap, 0, -1):
        if n % d == 0:
            return d
    return 1


def _tpu_generation_info():
    """Best-effort (vmem_capacity_bytes, tensorcores_per_chip)."""
    vmem_bytes = 128 * 1024 * 1024  # v5e / v6e default
    num_tcs = 1
    try:
        kind = jax.devices()[0].device_kind.lower()
    except Exception:
        kind = ""
    if "v7" in kind:
        vmem_bytes = 64 * 1024 * 1024
        num_tcs = 2
    elif ("v4" in kind) or ("v5p" in kind):
        num_tcs = 2
    elif ("v2" in kind) or ("v3" in kind):
        vmem_bytes = 16 * 1024 * 1024
    try:  # authoritative VMEM size when available
        info = pltpu.get_tpu_info()
        vmem_bytes = int(getattr(info, "vmem_capacity_bytes", vmem_bytes))
    except Exception:
        pass
    return vmem_bytes, num_tcs


def _max_pool_kernel(x_ref, o_ref, *, n_total, tile_n):
    """Reduce-max over the node axis.

    Grid: (B_blocks, D_blocks, N_blocks) -- B/D "parallel", N "arbitrary".
    x_ref: (tile_b, tile_n, tile_d) VMEM input tile
    o_ref: (tile_b, 1, tile_d)      accumulator (resident across the N axis)
    """
    k = pl.program_id(2)  # node-tile index (reduction axis, iterates fastest)

    def _accumulate(tile_max):
        @pl.when(k == 0)
        def _():
            o_ref[...] = tile_max

        @pl.when(k > 0)
        def _():
            o_ref[...] = jnp.maximum(o_ref[...], tile_max)

    x = x_ref[...]

    if n_total % tile_n != 0:
        # Only the last N tile pays the iota/compare/select mask; full tiles
        # take the plain sublane-reduce path (saves ~3 VPU ops per element).
        last = pl.num_programs(2) - 1

        @pl.when(k != last)
        def _():
            _accumulate(jnp.max(x, axis=1, keepdims=True))

        @pl.when(k == last)
        def _():
            valid = n_total - k * tile_n
            row = jax.lax.broadcasted_iota(jnp.int32, (1, tile_n, 1), 1)
            xm = jnp.where(row < valid, x, _neg_fill_value(x_ref.dtype))
            _accumulate(jnp.max(xm, axis=1, keepdims=True))
    else:
        _accumulate(jnp.max(x, axis=1, keepdims=True))


def pooling_layer(
    nodes: jax.Array,
    *,
    tile_b: int | None = None,
    tile_n: int | None = None,
    tile_d: int | None = None,
    target_block_bytes: int | None = None,
    buffer_count: int | None = None,
) -> jax.Array:
    """Max-pool over dim=1 of a (B, N, D) array, matching torch.max(nodes, 1)[0]."""
    B, N, D = nodes.shape
    dtype = nodes.dtype
    itemsize = jnp.dtype(dtype).itemsize

    vmem_bytes, num_tcs = _tpu_generation_info()
    multi_tc = num_tcs >= 2

    # Block budget: ~8 MiB, scaled down for small-VMEM generations so that the
    # double/triple-buffered footprint never threatens the physical capacity.
    if target_block_bytes is None:
        target_block_bytes = min(8 * 1024 * 1024, vmem_bytes // 8)
    target_block_bytes = max(target_block_bytes, 128 * 1024)

    # Sublane packing for the second-minor (node) axis: 8 rows for 4-byte,
    # 16 for 2-byte (bf16), 32 for 1-byte (int8/fp8) dtypes.
    sublane = max(8, 32 // max(1, itemsize))
    lane = 128

    # ---- feature (lane) tile -------------------------------------------------
    if tile_d is None:
        if D % lane != 0:
            tile_d = D  # full-extent block is always legal
        else:
            tile_d = D  # single-TC: full-D => fully contiguous batch slabs
            if multi_tc and B == 1 and D >= 2 * lane:
                # 2-TC chip and no batch to split: carve D so the parallel
                # grid axes hold >= 2 programs (otherwise one core idles).
                half_lanes = (D // lane) // 2
                tile_d = _largest_divisor_leq(D // lane, half_lanes) * lane
            # Keep even a minimum-height block inside the budget for huge D.
            max_lanes = max(1, target_block_bytes // max(1, sublane * itemsize * lane))
            if D // lane > max_lanes:
                tile_d = min(tile_d, _largest_divisor_leq(D // lane, max_lanes) * lane)
    assert D % tile_d == 0, "tile_d must divide D"

    # ---- batch tile ----------------------------------------------------------
    if tile_b is None:
        tile_b = B
        if multi_tc and (D // tile_d) < 2 and B >= 2:
            # Guarantee >= 2 parallel programs via the batch axis on 2-TC chips.
            tile_b = _largest_divisor_leq(B, max(1, B // 2))
        # Large-B guard: even a sublane-height block must fit the budget.
        max_b = max(1, target_block_bytes // max(1, sublane * tile_d * itemsize))
        if tile_b > max_b:
            tile_b = _largest_divisor_leq(B, max_b)
    assert B % tile_b == 0, "tile_b must divide B"
    # TODO(synk): for B == 1 and D < 256 on 2-TC chips the parallel axes
    # collapse to one program; splitting N into two parallel halves with a
    # final jnp.maximum combine in the wrapper would use both cores.

    # ---- node (reduction) tile ----------------------------------------------
    if tile_n is None:
        t = target_block_bytes // max(1, tile_b * tile_d * itemsize)
        t = max(sublane, (t // sublane) * sublane)
        tile_n = N if t >= N else t
    else:
        tile_n = min(tile_n, N)
        if tile_n < N:  # sanitize: partial blocks must be sublane multiples
            tile_n = max(sublane, (tile_n // sublane) * sublane)

    grid = (B // tile_b, D // tile_d, pl.cdiv(N, tile_n))  # reduction axis last

    # ---- VMEM footprint / buffering -------------------------------------------
    in_block_bytes = tile_b * tile_n * tile_d * itemsize
    out_block_bytes = tile_b * 8 * max(tile_d, lane) * itemsize  # padded accumulator

    if buffer_count is None:
        buffer_count = 2
        if multi_tc and hasattr(pl, "Buffered"):
            # Deeper input pipeline hides DMA-issue latency on fast-HBM parts.
            if 3 * in_block_bytes + 2 * out_block_bytes + (2 << 20) <= vmem_bytes // 2:
                buffer_count = 3

    vmem_needed = buffer_count * in_block_bytes + 2 * out_block_bytes + (2 << 20)
    vmem_limit = int(min(max(vmem_needed, 16 << 20), (vmem_bytes * 3) // 4))

    in_block = (tile_b, tile_n, tile_d)
    in_index = lambda b, d, k: (b, k, d)
    if buffer_count > 2 and hasattr(pl, "Buffered"):
        try:
            in_spec = pl.BlockSpec(in_block, in_index,
                                   pipeline_mode=pl.Buffered(buffer_count))
        except TypeError:
            in_spec = pl.BlockSpec(in_block, in_index)
    else:
        in_spec = pl.BlockSpec(in_block, in_index)

    kernel = functools.partial(_max_pool_kernel, n_total=N, tile_n=tile_n)

    # Output carries a singleton middle axis so the batch axis sits outside the
    # (8, 128)-constrained last two block dims; squeezed away after the call.
    out3 = pl.pallas_call(
        kernel,
        out_shape=jax.ShapeDtypeStruct((B, 1, D), dtype),
        grid_spec=pltpu.PrefetchScalarGridSpec(
            num_scalar_prefetch=0,
            grid=grid,
            in_specs=[in_spec],
            out_specs=pl.BlockSpec((tile_b, 1, tile_d), lambda b, d, k: (b, 0, d)),
        ),
        compiler_params=pltpu.CompilerParams(
            dimension_semantics=("parallel", "parallel", "arbitrary"),
            vmem_limit_bytes=vmem_limit,
        ),
        cost_estimate=pl.CostEstimate(
            flops=B * N * D,
            transcendentals=0,
            bytes_accessed=(B * N * D + B * D) * itemsize,
        ),
    )(nodes)
    return out3.reshape(B, D)


if __name__ == "__main__":
    key = jax.random.PRNGKey(0)

    # Shapes consistent with the module: (batch, num_nodes, feature_dim).
    B, N, D = 2, 16, 128
    nodes = jax.random.normal(key, (B, N, D), dtype=jnp.float32)

    pooled = jax.block_until_ready(pooling_layer(nodes))
    ref = jnp.max(nodes, axis=1)
    assert pooled.shape == (B, D)
    assert jnp.allclose(pooled, ref), "mismatch vs reference (default tiling)"

    # Masked partial-tile path: N not divisible by tile_n.
    N2 = 20
    nodes2 = jax.random.normal(jax.random.PRNGKey(1), (B, N2, D), dtype=jnp.float32)
    pooled2 = jax.block_until_ready(pooling_layer(nodes2, tile_n=8))
    ref2 = jnp.max(nodes2, axis=1)
    assert jnp.allclose(pooled2, ref2), "mismatch vs reference (partial tile)"

    # Non-128-multiple feature dim + 2-byte dtype (full-extent tile_d, sublane=16).
    nodes3 = jax.random.normal(jax.random.PRNGKey(2), (3, 10, 96), dtype=jnp.bfloat16)
    pooled3 = jax.block_until_ready(pooling_layer(nodes3))
    ref3 = jnp.max(nodes3, axis=1)
    assert jnp.allclose(pooled3.astype(jnp.float32), ref3.astype(jnp.float32)), \
        "mismatch vs reference (bf16, D=96)"

    print("KERNEL_OK")
</pallas_src>

<mosaic_0001>
module attributes {stable_mosaic.version = 11 : i64} {
  func.func @_max_pool_kernel(%arg0: i32, %arg1: i32, %arg2: i32, %arg3: memref<2x16x128xf32, #tpu.memory_space<vmem>>, %arg4: memref<2x1x128xf32, #tpu.memory_space<vmem>>) attributes {dimension_semantics = [#tpu.dimension_semantics<parallel>, #tpu.dimension_semantics<parallel>, #tpu.dimension_semantics<arbitrary>], iteration_bounds = array<i64: 1, 1, 1>, scalar_prefetch = 0 : i64, scratch_operands = 0 : i64, tpu.core_type = #tpu.core_type<tc>, window_params = [{transform_indices = @transform_0, window_bounds = array<i64: 2, 16, 128>}, {transform_indices = @transform_1, window_bounds = array<i64: 2, 1, 128>}]} {
    %c0 = arith.constant 0 : index
    %c0_0 = arith.constant 0 : index
    %c0_1 = arith.constant 0 : index
    %0 = vector.load %arg3[%c0, %c0_0, %c0_1] : memref<2x16x128xf32, #tpu.memory_space<vmem>>, vector<2x16x128xf32>
    %cst = arith.constant dense<0xFF800000> : vector<2x128xf32>
    %1 = vector.multi_reduction <maximumf>, %0, %cst [1] : vector<2x16x128xf32> to vector<2x128xf32>
    %2 = vector.shape_cast %1 : vector<2x128xf32> to vector<2x1x128xf32>
    %c0_i32 = arith.constant 0 : i32
    %3 = arith.cmpi eq, %arg2, %c0_i32 : i32
    %4 = arith.extui %3 : i1 to i32
    %c0_i32_2 = arith.constant 0 : i32
    %5 = arith.cmpi ne, %4, %c0_i32_2 : i32
    scf.if %5 {
      %c0_5 = arith.constant 0 : index
      %c0_6 = arith.constant 0 : index
      %c0_7 = arith.constant 0 : index
      %9 = vector.load %arg4[%c0_5, %c0_6, %c0_7] : memref<2x1x128xf32, #tpu.memory_space<vmem>>, vector<2x1x128xf32>
      tpu.vector_store %arg4[%c0_5, %c0_6, %c0_7], %2 {strides = array<i32>} : memref<2x1x128xf32, #tpu.memory_space<vmem>>, vector<2x1x128xf32>,
    } else {
    }
    %c0_i32_3 = arith.constant 0 : i32
    %6 = arith.cmpi sgt, %arg2, %c0_i32_3 : i32
    %7 = arith.extui %6 : i1 to i32
    %c0_i32_4 = arith.constant 0 : i32
    %8 = arith.cmpi ne, %7, %c0_i32_4 : i32
    scf.if %8 {
      %c0_5 = arith.constant 0 : index
      %c0_6 = arith.constant 0 : index
      %c0_7 = arith.constant 0 : index
      %9 = vector.load %arg4[%c0_5, %c0_6, %c0_7] : memref<2x1x128xf32, #tpu.memory_space<vmem>>, vector<2x1x128xf32>
      %10 = arith.maximumf %9, %2 : vector<2x1x128xf32>
      %c0_8 = arith.constant 0 : index
      %c0_9 = arith.constant 0 : index
      %c0_10 = arith.constant 0 : index
      %11 = vector.load %arg4[%c0_8, %c0_9, %c0_10] : memref<2x1x128xf32, #tpu.memory_space<vmem>>, vector<2x1x128xf32>
      tpu.vector_store %arg4[%c0_8, %c0_9, %c0_10], %10 {strides = array<i32>} : memref<2x1x128xf32, #tpu.memory_space<vmem>>, vector<2x1x128xf32>,
    } else {
    }
    return
  }
  func.func @transform_0(%arg0: i32, %arg1: i32, %arg2: i32) -> (i32, i32, i32) {
    %c0_i32 = arith.constant 0 : i32
    return %arg0, %arg2, %arg1 : i32, i32, i32
  }
  func.func @transform_1(%arg0: i32, %arg1: i32, %arg2: i32) -> (i32, i32, i32) {
    %c0_i32 = arith.constant 0 : i32
    %c0_i32_0 = arith.constant 0 : i32
    return %arg0, %c0_i32, %arg1 : i32, i32, i32
  }
}

</mosaic_0001>

<llo_original>
// kernel: tpu_custom_call.1
$region0: #{tpu_custom_call.1}
  #allocation0 [shape = 'u32[]', space=smem, size = 0x4, offset = 0x4, fixed_abs, tag = 'smem constant byte address 0x4 - core index']
  #allocation1 [shape = 'u32[144,128]{1,0:T(1,128)}', space=vmem, size = 0x12000, scoped, tag = 'internal scratch']
  %s0 = inlined_call_operand.hbm [shape: f32[2,16,128], index: 0, kind: input, shape index: {}]
  %s1 = inlined_call_operand.hbm [shape: f32[2,1,128], index: 1, kind: output, shape index: {}]
  %s2 = sld [smem:[#allocation0]]
  $region26: #{tpu_custom_call.1} parent=0
    _
  %s4 = ssub.s32 1, %s2
  %s5 = scalar_select 0, %s4, %s2
  $region1: #{tpu_custom_call.1} parent=0
    #allocation2 [shape = 'u8[16384]{0}', space=vmem, size = 0x4000, scoped, tag = 'input window, operand 0, single buffered']
    #allocation3 [shape = 's32[1]{0}', space=sflag, size = 0x4, scoped, tag = 'scoped memory for tpu_custom_call.1']
    #allocation4 [shape = 's32[1]{0}', space=sflag, size = 0x4, scoped, tag = 'scoped memory for tpu_custom_call.1']
    #allocation5 [shape = 'u8[1024]{0}', space=vmem, size = 0x400, scoped, tag = 'output window, operand 0, single buffered']
    %6 = vsyncpa [#allocation3], 0
    %7 = vsyncpa [#allocation4], 0
    // Predicated region
    $region2: #{tpu_custom_call.1} parent=1 // pred_check
      _
    $region3: #{tpu_custom_call.1} parent=1 // pred_check_branch
      %9 = sbr.rel (0) target = $region5
    $region4: #{tpu_custom_call.1} parent=1 // pred_region
      %s11 = ssub.s32 512, 512
      %12 = vsyncadd [#allocation3], %s11
      %s13 = sshll.u32 [#allocation2], 4
      %s14 = int_to_ptr.vmem [resolvable:$true] %s13
      %19 = dma.hbm_to_vmem [thread:$0]  %s0, 512, %s14, [#allocation3], 128, 128, 8
    $region5: #{tpu_custom_call.1} parent=1 // pred_fallthru
      _
    // Predicated region
    $region6: #{tpu_custom_call.1} parent=1 // pred_check
      _
    $region7: #{tpu_custom_call.1} parent=1 // pred_check_branch
      %21 = sbr.rel (0) target = $region9
    $region8: #{tpu_custom_call.1} parent=1 // pred_region
      %22 = dma.done [#allocation3], 512
    $region9: #{tpu_custom_call.1} parent=1 // pred_fallthru
      _
    %v23 = vld [vmem:[#allocation2] sm:$0xff]
    %v24 = vld [vmem:[#allocation2 + $0x8] sm:$0xff]
    %v25 = vld [vmem:[#allocation2 + $0x10] sm:$0xff]
    %v26 = vld [vmem:[#allocation2 + $0x18] sm:$0xff]
    %v27 = vmax.f32 %v23, %v24
    %v28 = vrot.slane %v27, 4
    %v29 = vmax.f32 %v27, %v28
    %v30 = vrot.slane %v29, 2
    %v31 = vmax.f32 %v29, %v30
    %v32 = vrot.slane %v31, 1
    %v33 = vmax.f32 %v31, %v32
    %v34 = vmax.f32 %v25, %v26
    %v35 = vrot.slane %v34, 4
    %v36 = vmax.f32 %v34, %v35
    %v37 = vrot.slane %v36, 2
    %v38 = vmax.f32 %v36, %v37
    %v39 = vrot.slane %v38, 1
    %v40 = vmax.f32 %v38, %v39
    %p41 = scmp.eq.s32.totalorder 0, 0
    // Predicated region
    $region10: #{tpu_custom_call.1} parent=1 // pred_check
      %p42 = pneg %p41
    $region11: #{tpu_custom_call.1} parent=1 // pred_check_branch
      %44 = sbr.rel (%p42) target = $region13
    $region12: #{tpu_custom_call.1} parent=1 // pred_region
      %45 = vst [vmem:[#allocation5] sm:$0x1] %v33
      %46 = vst [vmem:[#allocation5 + $0x1] sm:$0x1] %v40
    $region13: #{tpu_custom_call.1} parent=1 // pred_fallthru
      _
    %p47 = scmp.gt.s32.totalorder 0, 0
    // Predicated region
    $region14: #{tpu_custom_call.1} parent=1 // pred_check
      %p48 = pneg %p47
    $region15: #{tpu_custom_call.1} parent=1 // pred_check_branch
      %50 = sbr.rel (%p48) target = $region17
    $region16: #{tpu_custom_call.1} parent=1 // pred_region
      %v51 = vld [vmem:[#allocation5] sm:$0x1]
      %v52 = vld [vmem:[#allocation5 + $0x1] sm:$0x1]
      %v53 = vmax.f32 %v51, %v33
      %v54 = vmax.f32 %v52, %v40
      %55 = vst [vmem:[#allocation5] sm:$0x1] %v53
      %56 = vst [vmem:[#allocation5 + $0x1] sm:$0x1] %v54
    $region17: #{tpu_custom_call.1} parent=1 // pred_fallthru
      _
    // Predicated region
    $region18: #{tpu_custom_call.1} parent=1 // pred_check
      _
    $region19: #{tpu_custom_call.1} parent=1 // pred_check_branch
      %58 = sbr.rel (0) target = $region21
    $region20: #{tpu_custom_call.1} parent=1 // pred_region
      %s60 = ssub.s32 32, 32
      %61 = vsyncadd [#allocation4], %s60
      %s62 = sshll.u32 [#allocation5], 4
      %s63 = int_to_ptr.vmem [resolvable:$true] %s62
      %68 = dma.vmem_to_hbm [thread:$0]  %s63, 32, %s1, [#allocation4], 16, 16, 1
    $region21: #{tpu_custom_call.1} parent=1 // pred_fallthru
      _
    // Predicated region
    $region22: #{tpu_custom_call.1} parent=1 // pred_check
      _
    $region23: #{tpu_custom_call.1} parent=1 // pred_check_branch
      %70 = sbr.rel (0) target = $region25
    $region24: #{tpu_custom_call.1} parent=1 // pred_region
      %71 = dma.done [#allocation4], 32
    $region25: #{tpu_custom_call.1} parent=1 // pred_fallthru
      _
    %72 = vsyncpa [#allocation3], 1
    %73 = vsyncpa [#allocation4], 1

</llo_original>
